<compile_context>
chip_gen: v6e
topology: v6e:2x2x1
jax: 0.10.0
libtpu: 0.0.40
codegen_flags: <defaults>
</compile_context>

<pallas_src>
import jax
import jax.numpy as jnp
from jax.experimental import pallas as pl
from jax.experimental.pallas import tpu as pltpu

B, D, H, Z = 16, 32, 64, 16     # batch, input dim, hidden dim, latent dim
MAX_TILE_B = 1024               # cap on batch rows per grid step

# Packed activation slab: (batch, XE_COLS) f32; cols [0:D)=x, [D:D+Z)=eps.
XE_COLS = 64
# Packed weight slab: (W_ROWS, W_COLS) bf16, narrower weights zero-padded.
W_COLS = H                      # 64-lane slab
_R_W1 = 0                       # w1   : (D, H)
_R_W2LV = _R_W1 + D             # w2lv : (H, 2Z) fused [w2 | w2@wlv], padded to W_COLS
_R_WD1 = _R_W2LV + H            # wd1  : (Z, H)
_R_WD2 = _R_WD1 + Z             # wd2  : (H, D), padded to W_COLS
W_ROWS = _R_WD2 + H             # = 176 (all row offsets are multiples of 16 -> bf16-tile aligned)
B_COLS = W_COLS                 # bias slab: one 64-lane f32 row per bias, padded to 8 rows


def vae_kernel(xe_ref, w_ref, b_ref, out_ref):
    xe = xe_ref[...]                         # (tile_b, XE_COLS) f32
    x = xe[:, 0:D]                           # exact f32 input (used again by the MSE)
    eps = xe[:, D:D + Z]

    # ----- Encoder layer 1: ReLU(x @ w1 + b1) ----- (bf16 MXU, f32 accumulate)
    h = jnp.dot(x.astype(jnp.bfloat16), w_ref[_R_W1:_R_W1 + D, :],
                preferred_element_type=jnp.float32) + b_ref[0:1, :]
    h = jnp.maximum(h, 0.0)

    # ----- Fused encoder head: cols [0:Z)=mu, [Z:2Z)=logvar (LogVar folded in) -----
    ml = jnp.dot(h.astype(jnp.bfloat16), w_ref[_R_W2LV:_R_W2LV + H, :],
                 preferred_element_type=jnp.float32) + b_ref[1:2, :]
    mu = ml[:, 0:Z]
    logvar = ml[:, Z:2 * Z]

    # ----- KLD: exp(0.5*logvar) computed once; e*e == exp(logvar) -----
    e = jnp.exp(0.5 * logvar)
    kld = -0.5 * jnp.sum(1.0 + logvar - mu * mu - e * e)

    # ----- Reparameterize (noise supplied from host for determinism) -----
    z = mu + eps * e

    # ----- Decoder -----
    hd = jnp.dot(z.astype(jnp.bfloat16), w_ref[_R_WD1:_R_WD1 + Z, :],
                 preferred_element_type=jnp.float32) + b_ref[2:3, :]
    hd = jnp.maximum(hd, 0.0)
    rec = jnp.dot(hd.astype(jnp.bfloat16), w_ref[_R_WD2:_R_WD2 + H, :],
                  preferred_element_type=jnp.float32) + b_ref[3:4, :]
    recon = rec[:, 0:D]

    # ----- Partial loss for this batch tile: MSE(reduction='sum') + KLD -----
    diff = x - recon
    partial = jnp.sum(diff * diff) + kld
    # Lane-dense per-tile partial output (no serial cross-step accumulator).
    out_ref[...] = jnp.broadcast_to(partial.reshape(1, 1, 1), out_ref.shape)


def vae_forward(xe, wslab, bslab, *, tile_b=None):
    batch = xe.shape[0]
    if tile_b is None:
        tile_b = min(batch, MAX_TILE_B)
    assert batch % tile_b == 0, "batch must be a multiple of tile_b"
    assert tile_b % 8 == 0, "tile_b must be a multiple of 8 (f32 sublane)"
    num_tiles = batch // tile_b

    matmul_flops = 2 * batch * (D * H + H * 2 * Z + Z * H + H * D)
    cost = pl.CostEstimate(
        flops=matmul_flops + 12 * batch * Z + 3 * batch * D,
        transcendentals=batch * Z,
        bytes_accessed=(4 * int(xe.size) + 2 * int(wslab.size)
                        + 4 * int(bslab.size) + 4 * num_tiles * 8 * 128))

    partials = pl.pallas_call(
        vae_kernel,
        out_shape=jax.ShapeDtypeStruct((num_tiles, 8, 128), jnp.float32),
        grid=(num_tiles,),
        in_specs=[
            pl.BlockSpec((tile_b, XE_COLS), lambda i: (i, 0)),     # packed x|eps batch tile
            pl.BlockSpec((W_ROWS, W_COLS), lambda i: (0, 0)),      # weight slab: VMEM-resident
            pl.BlockSpec((8, B_COLS), lambda i: (0, 0)),           # bias slab:   VMEM-resident
        ],
        out_specs=pl.BlockSpec((1, 8, 128), lambda i: (i, 0, 0)),
        compiler_params=pltpu.CompilerParams(
            # Each tile writes an independent partial -> fully parallel grid.
            dimension_semantics=("parallel",),
            vmem_limit_bytes=32 * 1024 * 1024),
        cost_estimate=cost,
    )(xe, wslab, bslab)

    # Tiny final reduction over per-tile partials (done outside the kernel).
    return jnp.sum(partials[:, 0, 0])


def pack_inputs(x, eps):
    """Pack x and eps into one (batch, 64) f32 slab: one activation DMA/step."""
    batch = x.shape[0]
    xe = jnp.zeros((batch, XE_COLS), jnp.float32)
    xe = xe.at[:, 0:D].set(x).at[:, D:D + Z].set(eps)
    return xe


def pack_params(params):
    """Fold the LogVar head into the encoder output matmul and pack all params
    into one bf16 weight slab + one f32 bias slab (2 parameter DMAs total)."""
    (w1, b1, w2, b2, wlv, blv, wd1, bd1, wd2, bd2) = params
    # logvar = (h@w2 + b2) @ wlv + blv == h @ (w2@wlv) + (b2@wlv + blv)
    hi = jax.lax.Precision.HIGHEST
    wlv_f = jnp.dot(w2, wlv, precision=hi)              # (H, Z)
    blv_f = jnp.dot(b2, wlv, precision=hi) + blv        # (1, Z)
    w2lv = jnp.concatenate([w2, wlv_f], axis=1)         # (H, 2Z)
    b2lv = jnp.concatenate([b2, blv_f], axis=1)         # (1, 2Z)

    def pad_cols(a):
        return jnp.pad(a, ((0, 0), (0, W_COLS - a.shape[1])))

    wslab = jnp.concatenate(
        [pad_cols(w1), pad_cols(w2lv), pad_cols(wd1), pad_cols(wd2)],
        axis=0).astype(jnp.bfloat16)
    assert wslab.shape == (W_ROWS, W_COLS)

    bslab = jnp.concatenate(
        [pad_cols(b1), pad_cols(b2lv), pad_cols(bd1), pad_cols(bd2),
         jnp.zeros((4, B_COLS), jnp.float32)], axis=0)
    assert bslab.shape == (8, B_COLS)
    return wslab, bslab


def vae_reference(x, eps, params):
    """Pure-JAX reference following the original (unfused) PyTorch math."""
    (w1, b1, w2, b2, wlv, blv, wd1, bd1, wd2, bd2) = params
    h = jnp.maximum(x @ w1 + b1, 0.0)
    mu = h @ w2 + b2
    logvar = mu @ wlv + blv
    kld = -0.5 * jnp.sum(1.0 + logvar - mu ** 2 - jnp.exp(logvar))
    z = mu + eps * jnp.exp(0.5 * logvar)
    hd = jnp.maximum(z @ wd1 + bd1, 0.0)
    recon = hd @ wd2 + bd2
    mse = jnp.sum((x - recon) ** 2)
    return mse + kld


def init_params(key):
    ks = jax.random.split(key, 10)

    def lin(kw, kb, fan_in, fan_out):
        s = 1.0 / jnp.sqrt(fan_in)
        w = jax.random.uniform(kw, (fan_in, fan_out), jnp.float32, -s, s)
        b = jax.random.uniform(kb, (1, fan_out), jnp.float32, -s, s)
        return w, b

    w1, b1 = lin(ks[0], ks[1], D, H)
    w2, b2 = lin(ks[2], ks[3], H, Z)
    wlv, blv = lin(ks[4], ks[5], Z, Z)
    wd1, bd1 = lin(ks[6], ks[7], Z, H)
    wd2, bd2 = lin(ks[8], ks[9], H, D)
    return (w1, b1, w2, b2, wlv, blv, wd1, bd1, wd2, bd2)


if __name__ == "__main__":
    key = jax.random.PRNGKey(0)
    kx, keps, kp = jax.random.split(key, 3)

    x = jax.random.normal(kx, (B, D), jnp.float32)
    # TODO(synk): torch.randn_like noise is supplied from host as `eps` for determinism.
    eps = jax.random.normal(keps, (B, Z), jnp.float32)
    params = init_params(kp)

    xe = pack_inputs(x, eps)
    wslab, bslab = pack_params(params)

    loss = jax.block_until_ready(vae_forward(xe, wslab, bslab))
    ref = jax.block_until_ready(vae_reference(x, eps, params))

    assert jnp.isfinite(loss), "non-finite loss"
    # bf16 MXU inputs (matching TPU default matmul precision) -> loose-ish tol.
    assert jnp.allclose(loss, ref, rtol=5e-3, atol=1e-2), (loss, ref)
    print("KERNEL_OK")
</pallas_src>

<mosaic_0001>
module attributes {stable_mosaic.version = 11 : i64} {
  func.func @vae_kernel(%arg0: i32, %arg1: memref<16x64xf32, #tpu.memory_space<vmem>>, %arg2: memref<176x64xbf16, #tpu.memory_space<vmem>>, %arg3: memref<8x64xf32, #tpu.memory_space<vmem>>, %arg4: memref<1x8x128xf32, #tpu.memory_space<vmem>>) attributes {dimension_semantics = [#tpu.dimension_semantics<parallel>], iteration_bounds = array<i64: 1>, scalar_prefetch = 0 : i64, scratch_operands = 0 : i64, tpu.core_type = #tpu.core_type<tc>, window_params = [{transform_indices = @transform_0, window_bounds = array<i64: 16, 64>}, {pipeline_mode = #tpu.pipeline_mode<synchronous>, transform_indices = @transform_1, window_bounds = array<i64: 176, 64>}, {pipeline_mode = #tpu.pipeline_mode<synchronous>, transform_indices = @transform_2, window_bounds = array<i64: 8, 64>}, {transform_indices = @transform_3, window_bounds = array<i64: 1, 8, 128>}]} {
    %c0 = arith.constant 0 : index
    %c0_0 = arith.constant 0 : index
    %0 = vector.load %arg1[%c0, %c0_0] : memref<16x64xf32, #tpu.memory_space<vmem>>, vector<16x64xf32>
    %1 = vector.extract_strided_slice %0 {offsets = [0, 0], sizes = [16, 32], strides = [1, 1]} : vector<16x64xf32> to vector<16x32xf32>
    %2 = vector.extract_strided_slice %0 {offsets = [0, 32], sizes = [16, 16], strides = [1, 1]} : vector<16x64xf32> to vector<16x16xf32>
    %3 = arith.truncf %1 : vector<16x32xf32> to vector<16x32xbf16>
    %c0_1 = arith.constant 0 : index
    %c0_2 = arith.constant 0 : index
    %4 = vector.load %arg2[%c0_1, %c0_2] : memref<176x64xbf16, #tpu.memory_space<vmem>>, vector<32x64xbf16>
    %cst = arith.constant dense<0.000000e+00> : vector<16x64xf32>
    %5 = tpu.matmul %3, %4, %cst {dimension_numbers = #tpu.dot_dimension_numbers<[1], [0], [0], [1], [0, 0, 1, 1], [], []>} : vector<16x32xbf16>, vector<32x64xbf16>, vector<16x64xf32> -> vector<16x64xf32>
    %c0_3 = arith.constant 0 : index
    %c0_4 = arith.constant 0 : index
    %6 = vector.load %arg3[%c0_3, %c0_4] : memref<8x64xf32, #tpu.memory_space<vmem>>, vector<1x64xf32>
    %7 = vector.broadcast %6 : vector<1x64xf32> to vector<16x64xf32>
    %8 = arith.addf %5, %7 : vector<16x64xf32>
    %cst_5 = arith.constant 0.000000e+00 : f32
    %9 = vector.broadcast %cst_5 : f32 to vector<16x64xf32>
    %10 = arith.maximumf %8, %9 : vector<16x64xf32>
    %11 = arith.truncf %10 : vector<16x64xf32> to vector<16x64xbf16>
    %c32 = arith.constant 32 : index
    %c0_6 = arith.constant 0 : index
    %12 = vector.load %arg2[%c32, %c0_6] : memref<176x64xbf16, #tpu.memory_space<vmem>>, vector<64x64xbf16>
    %cst_7 = arith.constant dense<0.000000e+00> : vector<16x64xf32>
    %13 = tpu.matmul %11, %12, %cst_7 {dimension_numbers = #tpu.dot_dimension_numbers<[1], [0], [0], [1], [0, 0, 1, 1], [], []>} : vector<16x64xbf16>, vector<64x64xbf16>, vector<16x64xf32> -> vector<16x64xf32>
    %c1 = arith.constant 1 : index
    %c0_8 = arith.constant 0 : index
    %14 = vector.load %arg3[%c1, %c0_8] : memref<8x64xf32, #tpu.memory_space<vmem>>, vector<1x64xf32>
    %15 = vector.broadcast %14 : vector<1x64xf32> to vector<16x64xf32>
    %16 = arith.addf %13, %15 : vector<16x64xf32>
    %17 = vector.extract_strided_slice %16 {offsets = [0, 0], sizes = [16, 16], strides = [1, 1]} : vector<16x64xf32> to vector<16x16xf32>
    %18 = vector.extract_strided_slice %16 {offsets = [0, 16], sizes = [16, 16], strides = [1, 1]} : vector<16x64xf32> to vector<16x16xf32>
    %cst_9 = arith.constant 5.000000e-01 : f32
    %19 = vector.broadcast %cst_9 : f32 to vector<16x16xf32>
    %20 = arith.mulf %19, %18 : vector<16x16xf32>
    %21 = math.exp %20 : vector<16x16xf32>
    %cst_10 = arith.constant 1.000000e+00 : f32
    %22 = vector.broadcast %cst_10 : f32 to vector<16x16xf32>
    %23 = arith.addf %22, %18 : vector<16x16xf32>
    %24 = arith.mulf %17, %17 : vector<16x16xf32>
    %25 = arith.subf %23, %24 : vector<16x16xf32>
    %26 = arith.mulf %21, %21 : vector<16x16xf32>
    %27 = arith.subf %25, %26 : vector<16x16xf32>
    %28 = vector.shape_cast %27 : vector<16x16xf32> to vector<1x16x16xf32>
    %cst_11 = arith.constant dense<0.000000e+00> : vector<1xf32>
    %29 = vector.multi_reduction <add>, %28, %cst_11 [1, 2] : vector<1x16x16xf32> to vector<1xf32>
    %30 = vector.shape_cast %29 : vector<1xf32> to vector<1x1x1xf32>
    %31 = vector.extract %30[0, 0, 0] : f32 from vector<1x1x1xf32>
    %cst_12 = arith.constant -5.000000e-01 : f32
    %32 = arith.mulf %cst_12, %31 : f32
    %33 = arith.mulf %2, %21 : vector<16x16xf32>
    %34 = arith.addf %17, %33 : vector<16x16xf32>
    %35 = arith.truncf %34 : vector<16x16xf32> to vector<16x16xbf16>
    %c96 = arith.constant 96 : index
    %c0_13 = arith.constant 0 : index
    %36 = vector.load %arg2[%c96, %c0_13] : memref<176x64xbf16, #tpu.memory_space<vmem>>, vector<16x64xbf16>
    %cst_14 = arith.constant dense<0.000000e+00> : vector<16x64xf32>
    %37 = tpu.matmul %35, %36, %cst_14 {dimension_numbers = #tpu.dot_dimension_numbers<[1], [0], [0], [1], [0, 0, 1, 1], [], []>} : vector<16x16xbf16>, vector<16x64xbf16>, vector<16x64xf32> -> vector<16x64xf32>
    %c2 = arith.constant 2 : index
    %c0_15 = arith.constant 0 : index
    %38 = vector.load %arg3[%c2, %c0_15] : memref<8x64xf32, #tpu.memory_space<vmem>>, vector<1x64xf32>
    %39 = vector.broadcast %38 : vector<1x64xf32> to vector<16x64xf32>
    %40 = arith.addf %37, %39 : vector<16x64xf32>
    %cst_16 = arith.constant 0.000000e+00 : f32
    %41 = vector.broadcast %cst_16 : f32 to vector<16x64xf32>
    %42 = arith.maximumf %40, %41 : vector<16x64xf32>
    %43 = arith.truncf %42 : vector<16x64xf32> to vector<16x64xbf16>
    %c112 = arith.constant 112 : index
    %c0_17 = arith.constant 0 : index
    %44 = vector.load %arg2[%c112, %c0_17] : memref<176x64xbf16, #tpu.memory_space<vmem>>, vector<64x64xbf16>
    %cst_18 = arith.constant dense<0.000000e+00> : vector<16x64xf32>
    %45 = tpu.matmul %43, %44, %cst_18 {dimension_numbers = #tpu.dot_dimension_numbers<[1], [0], [0], [1], [0, 0, 1, 1], [], []>} : vector<16x64xbf16>, vector<64x64xbf16>, vector<16x64xf32> -> vector<16x64xf32>
    %c3 = arith.constant 3 : index
    %c0_19 = arith.constant 0 : index
    %46 = vector.load %arg3[%c3, %c0_19] : memref<8x64xf32, #tpu.memory_space<vmem>>, vector<1x64xf32>
    %47 = vector.broadcast %46 : vector<1x64xf32> to vector<16x64xf32>
    %48 = arith.addf %45, %47 : vector<16x64xf32>
    %49 = vector.extract_strided_slice %48 {offsets = [0, 0], sizes = [16, 32], strides = [1, 1]} : vector<16x64xf32> to vector<16x32xf32>
    %50 = arith.subf %1, %49 : vector<16x32xf32>
    %51 = arith.mulf %50, %50 : vector<16x32xf32>
    %52 = vector.shape_cast %51 : vector<16x32xf32> to vector<1x16x32xf32>
    %cst_20 = arith.constant dense<0.000000e+00> : vector<1xf32>
    %53 = vector.multi_reduction <add>, %52, %cst_20 [1, 2] : vector<1x16x32xf32> to vector<1xf32>
    %54 = vector.shape_cast %53 : vector<1xf32> to vector<1x1x1xf32>
    %55 = vector.extract %54[0, 0, 0] : f32 from vector<1x1x1xf32>
    %56 = arith.addf %55, %32 : f32
    %57 = vector.broadcast %56 : f32 to vector<1x1x1xf32>
    %58 = vector.shape_cast %57 : vector<1x1x1xf32> to vector<1x1x1xf32>
    %59 = vector.broadcast %58 : vector<1x1x1xf32> to vector<1x8x128xf32>
    %c0_21 = arith.constant 0 : index
    %c0_22 = arith.constant 0 : index
    %c0_23 = arith.constant 0 : index
    %60 = vector.load %arg4[%c0_21, %c0_22, %c0_23] : memref<1x8x128xf32, #tpu.memory_space<vmem>>, vector<1x8x128xf32>
    tpu.vector_store %arg4[%c0_21, %c0_22, %c0_23], %59 {strides = array<i32>} : memref<1x8x128xf32, #tpu.memory_space<vmem>>, vector<1x8x128xf32>,
    return
  }
  func.func @transform_0(%arg0: i32) -> (i32, i32) {
    %c0_i32 = arith.constant 0 : i32
    %c0_i32_0 = arith.constant 0 : i32
    return %arg0, %c0_i32 : i32, i32
  }
  func.func @transform_1(%arg0: i32) -> (i32, i32) {
    %c0_i32 = arith.constant 0 : i32
    %c0_i32_0 = arith.constant 0 : i32
    %c0_i32_1 = arith.constant 0 : i32
    return %c0_i32, %c0_i32_0 : i32, i32
  }
  func.func @transform_2(%arg0: i32) -> (i32, i32) {
    %c0_i32 = arith.constant 0 : i32
    %c0_i32_0 = arith.constant 0 : i32
    %c0_i32_1 = arith.constant 0 : i32
    return %c0_i32, %c0_i32_0 : i32, i32
  }
  func.func @transform_3(%arg0: i32) -> (i32, i32, i32) {
    %c0_i32 = arith.constant 0 : i32
    %c0_i32_0 = arith.constant 0 : i32
    %c0_i32_1 = arith.constant 0 : i32
    return %arg0, %c0_i32, %c0_i32_0 : i32, i32, i32
  }
}

</mosaic_0001>

<llo_original>
// kernel: tpu_custom_call.1
$region0: #{tpu_custom_call.1}
  #allocation0 [shape = 'u32[]', space=smem, size = 0x4, offset = 0x4, fixed_abs, tag = 'smem constant byte address 0x4 - core index']
  #allocation1 [shape = 'u32[144,128]{1,0:T(1,128)}', space=vmem, size = 0x12000, scoped, tag = 'internal scratch']
  %s0 = inlined_call_operand.vmem [shape: f32[16,64], index: 0, kind: input, shape index: {}]
  %s1 = inlined_call_operand.vmem [shape: bf16[176,64], index: 1, kind: input, shape index: {}]
  %s2 = inlined_call_operand.vmem [shape: f32[8,64], index: 2, kind: input, shape index: {}]
  %s3 = inlined_call_operand.hbm [shape: f32[1,8,128], index: 3, kind: output, shape index: {}]
  %s4 = sld [smem:[#allocation0]]
  $region22: #{tpu_custom_call.1} parent=0
    _
  %s6 = ssub.s32 1, %s4
  %s7 = scalar_select 0, %s6, %s4
  $region1: #{tpu_custom_call.1} parent=0
    #allocation2 [shape = 'u8[4096]{0}', space=vmem, size = 0x1000, scoped, tag = 'output window, operand 0, single buffered']
    #allocation3 [shape = 's32[1]{0}', space=sflag, size = 0x4, scoped, tag = 'scoped memory for tpu_custom_call.1']
    %8 = vsyncpa [#allocation3], 0
    // Predicated region
    $region2: #{tpu_custom_call.1} parent=1 // pred_check
      _
    $region3: #{tpu_custom_call.1} parent=1 // pred_check_branch
      %10 = sbr.rel (0) target = $region5
    $region4: #{tpu_custom_call.1} parent=1 // pred_region
      _
    $region5: #{tpu_custom_call.1} parent=1 // pred_fallthru
      _
    // Predicated region
    $region6: #{tpu_custom_call.1} parent=1 // pred_check
      _
    $region7: #{tpu_custom_call.1} parent=1 // pred_check_branch
      %12 = sbr.rel (0) target = $region9
    $region8: #{tpu_custom_call.1} parent=1 // pred_region
      _
    $region9: #{tpu_custom_call.1} parent=1 // pred_fallthru
      _
    // Predicated region
    $region10: #{tpu_custom_call.1} parent=1 // pred_check
      _
    $region11: #{tpu_custom_call.1} parent=1 // pred_check_branch
      %14 = sbr.rel (0) target = $region13
    $region12: #{tpu_custom_call.1} parent=1 // pred_region
      _
    $region13: #{tpu_custom_call.1} parent=1 // pred_fallthru
      _
    %v16 = vld [vmem:[%s0] sm:$0xff]
    %v17 = vld [vmem:[%s0 + $0x8] sm:$0xff]
    %v18 = vpack.c.bf16 %v17, %v16
    %v19 = vld [vmem:[%s1] sm:$0xf]
    %v20 = vld [vmem:[%s1 + $0x4] sm:$0xf]
    %v21 = vld [vmem:[%s1 + $0x8] sm:$0xf]
    %v22 = vld [vmem:[%s1 + $0xc] sm:$0xf]
    %v23 = vld [vmem:[%s2] sm:$0x1]
    %v24 = vlaneseq
    %v25 = vshrl.u32 %v24, 7
    %v26 = vsub.s32 0, %v25
    %v27 = vrot.slane %v23, %v26
    %v32 = vunpack.c.l.b16 %v19
    %v33 = vunpack.c.l.b16 %v20
    %v34 = vunpack.c.l.b16 %v21
    %v35 = vunpack.c.l.b16 %v22
    %v36 = vpack.c.b16 %v33, %v32
    %v37 = vpack.c.b16 %v35, %v34
    %vm40 = vcmask 261120
    %v42 = vsel %vm40, %v18, 0
    %44 = vmatprep.subr.bf16.mxu0 0
    %45 = vmatpush1.bf16.msra.mxu0 0
    %46 = vmatprep.subr.bf16.mxu0 0
    %47 = vmatpush1.bf16.msra.mxu0 0
    %48 = vmatprep.subr.bf16.mxu0 0
    %49 = vmatpush1.bf16.msra.mxu0 0
    %50 = vmatprep.subr.bf16.mxu0 0
    %51 = vmatpush1.bf16.msra.mxu0 0
    %52 = vmatprep.subr.bf16.mxu0 0
    %53 = vmatpush1.bf16.msra.mxu0 0
    %54 = vmatprep.subr.bf16.mxu0 0
    %55 = vmatpush1.bf16.msra.mxu0 0
    %56 = vmatprep.subr.bf16.mxu0 0
    %57 = vmatpush1.bf16.msra.mxu0 %v37
    %58 = vmatprep.subr.bf16.mxu0 0
    %59 = vmatpush1.bf16.msra.mxu0 %v36
    %60 = vmatprep.subr.bf16.mxu0 0
    %61 = vmatpush2.bf16.msra.mxu0 0
    %62 = vmatprep.subr.bf16.mxu0 0
    %63 = vmatpush2.bf16.msra.mxu0 0
    %64 = vmatprep.subr.bf16.mxu0 0
    %65 = vmatpush2.bf16.msra.mxu0 0
    %66 = vmatprep.subr.bf16.mxu0 0
    %67 = vmatpush2.bf16.msra.mxu0 0
    %68 = vmatprep.subr.bf16.mxu0 0
    %69 = vmatpush2.bf16.msra.mxu0 0
    %70 = vmatprep.subr.bf16.mxu0 0
    %71 = vmatpush2.bf16.msra.mxu0 0
    %72 = vmatprep.subr.bf16.mxu0 0
    %73 = vmatpush2.bf16.msra.mxu0 0
    %74 = vmatprep.subr.bf16.mxu0 0
    %75 = vmatpush2.bf16.msra.mxu0 0
    %76 = vmatprep.mubr.bf16.mxu0 0
    %77 = vmatmul.mubr.bf16.gmra.mxu0 %v42
    %v78 = vpop.f32.mrf.mxu0
    %v79 = vadd.f32 %v27, %v78
    %v80 = vpop.f32.mrf.mxu0
    %v81 = vpop.f32.mrf.mxu0
    %v82 = vadd.f32 %v27, %v81
    %v83 = vpop.f32.mrf.mxu0
    %84 = vdwg.mxu0
    %v85 = vmax.f32 %v79, 0.0
    %v86 = vmax.f32 %v82, 0.0
    %v87 = vpack.c.bf16 %v86, %v85
    %v88 = vld [vmem:[%s1 + $0x10] sm:$0xf]
    %v89 = vld [vmem:[%s1 + $0x14] sm:$0xf]
    %v90 = vld [vmem:[%s1 + $0x18] sm:$0xf]
    %v91 = vld [vmem:[%s1 + $0x1c] sm:$0xf]
    %v92 = vld [vmem:[%s1 + $0x20] sm:$0xf]
    %v93 = vld [vmem:[%s1 + $0x24] sm:$0xf]
    %v94 = vld [vmem:[%s1 + $0x28] sm:$0xf]
    %v95 = vld [vmem:[%s1 + $0x2c] sm:$0xf]
    %v96 = vld [vmem:[%s2 + $0x1] sm:$0x1]
    %v97 = vlaneseq
    %v98 = vshrl.u32 %v97, 7
    %v99 = vsub.s32 0, %v98
    %v100 = vrot.slane %v96, %v99
    %v109 = vunpack.c.l.b16 %v88
    %v110 = vunpack.c.l.b16 %v89
    %v111 = vunpack.c.l.b16 %v90
    %v112 = vunpack.c.l.b16 %v91
    %v113 = vunpack.c.l.b16 %v92
    %v114 = vunpack.c.l.b16 %v93
    %v115 = vunpack.c.l.b16 %v94
    %v116 = vunpack.c.l.b16 %v95
    %v117 = vpack.c.b16 %v110, %v109
    %v118 = vpack.c.b16 %v112, %v111
    %v119 = vpack.c.b16 %v114, %v113
    %v120 = vpack.c.b16 %v116, %v115
    %vm125 = vcmask 523264
    %v127 = vsel %vm125, %v87, 0
    %129 = vmatprep.subr.bf16.mxu0 0
    %130 = vmatpush1.bf16.msra.mxu0 0
    %131 = vmatprep.subr.bf16.mxu0 0
    %132 = vmatpush1.bf16.msra.mxu0 0
    %133 = vmatprep.subr.bf16.mxu0 0
    %134 = vmatpush1.bf16.msra.mxu0 0
    %135 = vmatprep.subr.bf16.mxu0 0
    %136 = vmatpush1.bf16.msra.mxu0 0
    %137 = vmatprep.subr.bf16.mxu0 0
    %138 = vmatpush1.bf16.msra.mxu0 %v120
    %139 = vmatprep.subr.bf16.mxu0 0
    %140 = vmatpush1.bf16.msra.mxu0 %v119
    %141 = vmatprep.subr.bf16.mxu0 0
    %142 = vmatpush1.bf16.msra.mxu0 %v118
    %143 = vmatprep.subr.bf16.mxu0 0
    %144 = vmatpush1.bf16.msra.mxu0 %v117
    %145 = vmatprep.subr.bf16.mxu0 0
    %146 = vmatpush2.bf16.msra.mxu0 0
    %147 = vmatprep.subr.bf16.mxu0 0
    %148 = vmatpush2.bf16.msra.mxu0 0
    %149 = vmatprep.subr.bf16.mxu0 0
    %150 = vmatpush2.bf16.msra.mxu0 0
    %151 = vmatprep.subr.bf16.mxu0 0
    %152 = vmatpush2.bf16.msra.mxu0 0
    %153 = vmatprep.subr.bf16.mxu0 0
    %154 = vmatpush2.bf16.msra.mxu0 0
    %155 = vmatprep.subr.bf16.mxu0 0
    %156 = vmatpush2.bf16.msra.mxu0 0
    %157 = vmatprep.subr.bf16.mxu0 0
    %158 = vmatpush2.bf16.msra.mxu0 0
    %159 = vmatprep.subr.bf16.mxu0 0
    %160 = vmatpush2.bf16.msra.mxu0 0
    %161 = vmatprep.mubr.bf16.mxu0 0
    %162 = vmatmul.mubr.bf16.gmra.mxu0 %v127
    %v163 = vpop.f32.mrf.mxu0
    %v164 = vadd.f32 %v100, %v163
    %v165 = vpop.f32.mrf.mxu0
    %v166 = vpop.f32.mrf.mxu0
    %v167 = vadd.f32 %v100, %v166
    %v168 = vpop.f32.mrf.mxu0
    %169 = vdwg.mxu0
    %v170 = vmul.f32 %v164, 0.5
    %v171 = vmul.f32 %v167, 0.5
    %v172 = vmul.f32 %v170, 1.442695
    %v173 = vpow.pop %v172
    %v174 = vmul.f32 %v171, 1.442695
    %v175 = vpow.pop %v174
    %v176 = vadd.f32 %v164, 1.0
    %v177 = vadd.f32 %v167, 1.0
    %v178 = vmul.f32 %v164, %v164
    %v179 = vmul.f32 %v167, %v167
    %182 = vrot.lane.b32.xlu0 %v178, 16
    %v183 = vpop.permute.xlu0 %182
    %184 = vrot.lane.b32.xlu0 %v179, 16
    %v185 = vpop.permute.xlu0 %184
    %v188 = vsub.f32 %v176, %v183
    %v189 = vsub.f32 %v177, %v185
    %v190 = vmul.f32 %v173, %v173
    %v191 = vmul.f32 %v175, %v175
    %v192 = vsub.f32 %v188, %v190
    %v193 = vsub.f32 %v189, %v191
    %196 = vrot.lane.b32.xlu0 %v192, 112
    %v197 = vpop.permute.xlu0 %196
    %198 = vrot.lane.b32.xlu0 %v193, 112
    %v199 = vpop.permute.xlu0 %198
    %vm202 = vcmask 130048
    %v203 = vsel %vm202, %v197, 0.0
    %v204 = vsel %vm202, %v199, 0.0
    %v205 = vadd.f32 %v203, %v204
    %206 = vadd.xlane.f32.xlu0 %v205
    %v207 = vpop.xlane.xlu0 %206
    %v208 = vrot.slane %v207, 4
    %v209 = vadd.f32 %v207, %v208
    %v210 = vrot.slane %v209, 2
    %v211 = vadd.f32 %v209, %v210
    %v212 = vrot.slane %v211, 1
    %v213 = vadd.f32 %v211, %v212
    %s214 = vtos %v213
    %s215 = smul.f32 %s214, -0.5
    %218 = vrot.lane.b32.xlu0 %v173, 16
    %v219 = vpop.permute.xlu0 %218
    %220 = vrot.lane.b32.xlu0 %v175, 16
    %v221 = vpop.permute.xlu0 %220
    %v224 = vmul.f32 %v16, %v219
    %v225 = vmul.f32 %v17, %v221
    %228 = vrot.lane.b32.xlu0 %v224, 96
    %v229 = vpop.permute.xlu0 %228
    %230 = vrot.lane.b32.xlu0 %v225, 96
    %v231 = vpop.permute.xlu0 %230
    %v234 = vadd.f32 %v164, %v229
    %v235 = vadd.f32 %v167, %v231
    %v236 = vpack.c.bf16 %v235, %v234
    %v237 = vld [vmem:[%s1 + $0x30] sm:$0xf]
    %v238 = vld [vmem:[%s1 + $0x34] sm:$0xf]
    %v239 = vld [vmem:[%s2 + $0x2] sm:$0x1]
    %v240 = vlaneseq
    %v241 = vshrl.u32 %v240, 7
    %v242 = vsub.s32 0, %v241
    %v243 = vrot.slane %v239, %v242
    %v246 = vunpack.c.l.b16 %v237
    %v247 = vunpack.c.l.b16 %v238
    %v248 = vpack.c.b16 %v247, %v246
    %v251 = vsel %vm202, %v236, 0
    %253 = vmatprep.subr.bf16.mxu0 0
    %254 = vmatpush1.bf16.msra.mxu0 0
    %255 = vmatprep.subr.bf16.mxu0 0
    %256 = vmatpush1.bf16.msra.mxu0 0
    %257 = vmatprep.subr.bf16.mxu0 0
    %258 = vmatpush1.bf16.msra.mxu0 0
    %259 = vmatprep.subr.bf16.mxu0 0
    %260 = vmatpush1.bf16.msra.mxu0 0
    %261 = vmatprep.subr.bf16.mxu0 0
    %262 = vmatpush1.bf16.msra.mxu0 0
    %263 = vmatprep.subr.bf16.mxu0 0
    %264 = vmatpush1.bf16.msra.mxu0 0
    %265 = vmatprep.subr.bf16.mxu0 0
    %266 = vmatpush1.bf16.msra.mxu0 0
    %267 = vmatprep.subr.bf16.mxu0 0
    %268 = vmatpush1.bf16.msra.mxu0 %v248
    %269 = vmatprep.subr.bf16.mxu0 0
    %270 = vmatpush2.bf16.msra.mxu0 0
    %271 = vmatprep.subr.bf16.mxu0 0
    %272 = vmatpush2.bf16.msra.mxu0 0
    %273 = vmatprep.subr.bf16.mxu0 0
    %274 = vmatpush2.bf16.msra.mxu0 0
    %275 = vmatprep.subr.bf16.mxu0 0
    %276 = vmatpush2.bf16.msra.mxu0 0
    %277 = vmatprep.subr.bf16.mxu0 0
    %278 = vmatpush2.bf16.msra.mxu0 0
    %279 = vmatprep.subr.bf16.mxu0 0
    %280 = vmatpush2.bf16.msra.mxu0 0
    %281 = vmatprep.subr.bf16.mxu0 0
    %282 = vmatpush2.bf16.msra.mxu0 0
    %283 = vmatprep.subr.bf16.mxu0 0
    %284 = vmatpush2.bf16.msra.mxu0 0
    %285 = vmatprep.mubr.bf16.mxu0 0
    %286 = vmatmul.mubr.bf16.gmra.mxu0 %v251
    %v287 = vpop.f32.mrf.mxu0
    %v288 = vadd.f32 %v243, %v287
    %v289 = vpop.f32.mrf.mxu0
    %v290 = vpop.f32.mrf.mxu0
    %v291 = vadd.f32 %v243, %v290
    %v292 = vpop.f32.mrf.mxu0
    %293 = vdwg.mxu0
    %v294 = vmax.f32 %v288, 0.0
    %v295 = vmax.f32 %v291, 0.0
    %v296 = vpack.c.bf16 %v295, %v294
    %v297 = vld [vmem:[%s1 + $0x38] sm:$0xf]
    %v298 = vld [vmem:[%s1 + $0x3c] sm:$0xf]
    %v299 = vld [vmem:[%s1 + $0x40] sm:$0xf]
    %v300 = vld [vmem:[%s1 + $0x44] sm:$0xf]
    %v301 = vld [vmem:[%s1 + $0x48] sm:$0xf]
    %v302 = vld [vmem:[%s1 + $0x4c] sm:$0xf]
    %v303 = vld [vmem:[%s1 + $0x50] sm:$0xf]
    %v304 = vld [vmem:[%s1 + $0x54] sm:$0xf]
    %v305 = vld [vmem:[%s2 + $0x3] sm:$0x1]
    %v306 = vlaneseq
    %v307 = vshrl.u32 %v306, 7
    %v308 = vsub.s32 0, %v307
    %v309 = vrot.slane %v305, %v308
    %v318 = vunpack.c.l.b16 %v297
    %v319 = vunpack.c.l.b16 %v298
    %v320 = vunpack.c.l.b16 %v299
    %v321 = vunpack.c.l.b16 %v300
    %v322 = vunpack.c.l.b16 %v301
    %v323 = vunpack.c.l.b16 %v302
    %v324 = vunpack.c.l.b16 %v303
    %v325 = vunpack.c.l.b16 %v304
    %v326 = vpack.c.b16 %v319, %v318
    %v327 = vpack.c.b16 %v321, %v320
    %v328 = vpack.c.b16 %v323, %v322
    %v329 = vpack.c.b16 %v325, %v324
    %v335 = vsel %vm125, %v296, 0
    %337 = vmatprep.subr.bf16.mxu0 0
    %338 = vmatpush1.bf16.msra.mxu0 0
    %339 = vmatprep.subr.bf16.mxu0 0
    %340 = vmatpush1.bf16.msra.mxu0 0
    %341 = vmatprep.subr.bf16.mxu0 0
    %342 = vmatpush1.bf16.msra.mxu0 0
    %343 = vmatprep.subr.bf16.mxu0 0
    %344 = vmatpush1.bf16.msra.mxu0 0
    %345 = vmatprep.subr.bf16.mxu0 0
    %346 = vmatpush1.bf16.msra.mxu0 %v329
    %347 = vmatprep.subr.bf16.mxu0 0
    %348 = vmatpush1.bf16.msra.mxu0 %v328
    %349 = vmatprep.subr.bf16.mxu0 0
    %350 = vmatpush1.bf16.msra.mxu0 %v327
    %351 = vmatprep.subr.bf16.mxu0 0
    %352 = vmatpush1.bf16.msra.mxu0 %v326
    %353 = vmatprep.subr.bf16.mxu0 0
    %354 = vmatpush2.bf16.msra.mxu0 0
    %355 = vmatprep.subr.bf16.mxu0 0
    %356 = vmatpush2.bf16.msra.mxu0 0
    %357 = vmatprep.subr.bf16.mxu0 0
    %358 = vmatpush2.bf16.msra.mxu0 0
    %359 = vmatprep.subr.bf16.mxu0 0
    %360 = vmatpush2.bf16.msra.mxu0 0
    %361 = vmatprep.subr.bf16.mxu0 0
    %362 = vmatpush2.bf16.msra.mxu0 0
    %363 = vmatprep.subr.bf16.mxu0 0
    %364 = vmatpush2.bf16.msra.mxu0 0
    %365 = vmatprep.subr.bf16.mxu0 0
    %366 = vmatpush2.bf16.msra.mxu0 0
    %367 = vmatprep.subr.bf16.mxu0 0
    %368 = vmatpush2.bf16.msra.mxu0 0
    %369 = vmatprep.mubr.bf16.mxu0 0
    %370 = vmatmul.mubr.bf16.gmra.mxu0 %v335
    %v371 = vpop.f32.mrf.mxu0
    %v372 = vadd.f32 %v309, %v371
    %v373 = vpop.f32.mrf.mxu0
    %v374 = vpop.f32.mrf.mxu0
    %v375 = vadd.f32 %v309, %v374
    %v376 = vpop.f32.mrf.mxu0
    %377 = vdwg.mxu0
    %v378 = vsub.f32 %v16, %v372
    %v379 = vsub.f32 %v17, %v375
    %v380 = vmul.f32 %v378, %v378
    %v381 = vmul.f32 %v379, %v379
    %v382 = vsel %vm40, %v380, 0.0
    %v383 = vsel %vm40, %v381, 0.0
    %v384 = vadd.f32 %v382, %v383
    %385 = vadd.xlane.f32.xlu0 %v384
    %v386 = vpop.xlane.xlu0 %385
    %v387 = vrot.slane %v386, 4
    %v388 = vadd.f32 %v386, %v387
    %v389 = vrot.slane %v388, 2
    %v390 = vadd.f32 %v388, %v389
    %v391 = vrot.slane %v390, 1
    %v392 = vadd.f32 %v390, %v391
    %s393 = vtos %v392
    %s394 = sadd.f32 %s393, %s215
    %v395 = vstv %s394
    %396 = vst [vmem:[#allocation2] sm:$0xff] %v395
    // Predicated region
    $region14: #{tpu_custom_call.1} parent=1 // pred_check
      _
    $region15: #{tpu_custom_call.1} parent=1 // pred_check_branch
      %398 = sbr.rel (0) target = $region17
    $region16: #{tpu_custom_call.1} parent=1 // pred_region
      %s400 = ssub.s32 128, 128
      %401 = vsyncadd [#allocation3], %s400
      %s403 = sshll.u32 [#allocation2], 4
      %s404 = int_to_ptr.vmem [resolvable:$true] %s403
      %406 = dma.vmem_to_hbm [thread:$0]  %s404, 128, %s3, [#allocation3]
    $region17: #{tpu_custom_call.1} parent=1 // pred_fallthru
      _
    // Predicated region
    $region18: #{tpu_custom_call.1} parent=1 // pred_check
      _
    $region19: #{tpu_custom_call.1} parent=1 // pred_check_branch
      %408 = sbr.rel (0) target = $region21
    $region20: #{tpu_custom_call.1} parent=1 // pred_region
      %409 = dma.done [#allocation3], 128
    $region21: #{tpu_custom_call.1} parent=1 // pred_fallthru
      _
    %410 = vsyncpa [#allocation3], 1

</llo_original>
